<compile_context>
chip_gen: v7x
topology: tpu7x:2x2x1
jax: 0.10.0
libtpu: 0.0.40
codegen_flags: <defaults>
</compile_context>

<pallas_src>
import jax
import jax.numpy as jnp
from jax.experimental import pallas as pl
from jax.experimental.pallas import tpu as pltpu

_LANE = 128
_TILE_BUDGET_BYTES = 6 * 1024 * 1024      # per pipelined buffer
_VMEM_LIMIT_CAP = 48 * 1024 * 1024        # stays inside v7x's 64 MiB physical VMEM


def _largest_aligned_divisor(dim, align, cap):
    """Largest multiple of `align` that divides `dim` and is <= cap (or None)."""
    t = (min(cap, dim) // align) * align
    while t >= align:
        if dim % t == 0:
            return t
        t -= align
    return None


def _choose_w_tile(N, C, H, W, itemsize):
    """Pick w_blk with full-C, full-H tiles; shrink only W to meet the budget."""
    per_w_bytes = C * H * itemsize
    if per_w_bytes * W <= _TILE_BUDGET_BYTES:
        w_blk = W
    else:
        w_blk = _largest_aligned_divisor(
            W, _LANE, max(_TILE_BUDGET_BYTES // per_w_bytes, 1))
        if w_blk is None:
            # No lane-aligned divisor of W fits the budget (e.g. large prime W):
            # fall back to the full dim; vmem_limit below is clamped so we never
            # request more than the smallest physical VMEM.
            w_blk = W
    # Megacore (v7x): guarantee at least one parallel grid axis of extent >= 2
    # so both TensorCores get work on this bandwidth-bound kernel.
    if N == 1 and w_blk == W:
        half = _largest_aligned_divisor(W, _LANE, W // 2)
        if half is not None:
            w_blk = half
    return w_blk


def _tc_kernel(x_ref, o_ref):
    # x_ref: (C, H, w_blk) input tile (lane dim = w)
    # o_ref: (w_blk, H*C)  lane-dense output tile
    c, h, w = x_ref.shape
    x = x_ref[...]
    # Step 1: swap the two non-lane dims (c, h, w) -> (h, c, w).  The lane dim
    # (w) stays put, so no cross-lane shuffles are needed here.
    xt = jnp.transpose(x, (1, 0, 2))
    # Step 2: collapse the leading dims and do a single native 2D
    # (sublane, lane) transpose: (h*c, w) -> (w, h*c).  This keeps the XLU on
    # the plain vxpose path instead of a rank-3 lane<->major permute.
    o_ref[...] = jnp.transpose(xt.reshape(h * c, w), (1, 0))


@jax.jit
def tc_forward(x):
    """Pallas equivalent of torch.transpose(x, 1, 3) for a 4-D NCHW input."""
    N, C, H, W = x.shape
    itemsize = jnp.dtype(x.dtype).itemsize

    w_blk = _choose_w_tile(N, C, H, W, itemsize)
    num_w = W // w_blk
    tile_bytes = C * H * w_blk * itemsize
    grid = (N, num_w)

    # Input stays NCHW; each grid step pulls the full (C, H) extent and a
    # w-slice -> contiguous H*w_blk-element DMA run per channel.
    in_spec = pl.BlockSpec(
        (pl.Squeezed(), C, H, w_blk),
        lambda n, wi: (n, 0, 0, wi),
    )
    # Output declared lane-dense as (N, W, H*C): wide unmasked stores even
    # when C < 128.  Reshaped back to (N, W, H, C) in the wrapper (free).
    out_spec = pl.BlockSpec(
        (pl.Squeezed(), w_blk, H * C),
        lambda n, wi: (n, wi, 0),
    )

    # 4 pipelined buffers (2 in + 2 out) plus >=1 tile of headroom for the
    # in-kernel transpose intermediates; clamped to the smallest physical VMEM.
    vmem_limit = int(min(_VMEM_LIMIT_CAP,
                         max(32 * 1024 * 1024,
                             6 * tile_bytes + 2 * 1024 * 1024)))

    out_flat = pl.pallas_call(
        _tc_kernel,
        out_shape=jax.ShapeDtypeStruct((N, W, H * C), x.dtype),
        grid_spec=pl.GridSpec(
            grid=grid,
            in_specs=[in_spec],
            out_specs=out_spec,
        ),
        compiler_params=pltpu.CompilerParams(
            # every grid step writes a disjoint output block -> all parallel,
            # so megacore chips can shard either axis across TensorCores.
            dimension_semantics=("parallel", "parallel"),
            vmem_limit_bytes=vmem_limit,
        ),
    )(x)

    return out_flat.reshape(N, W, H, C)


if __name__ == "__main__":
    key = jax.random.PRNGKey(0)
    # Small NCHW input: batch=2, channels=4, H=16, W=16
    x = jax.random.normal(key, (2, 4, 16, 16), dtype=jnp.float32)

    out = jax.block_until_ready(tc_forward(x))

    # Reference: torch.transpose(x, 1, 3) == jnp.transpose(x, (0, 3, 2, 1))
    ref = jnp.transpose(x, (0, 3, 2, 1))
    assert out.shape == ref.shape, (out.shape, ref.shape)
    assert jnp.array_equal(out, ref), "Pallas transpose mismatch"

    print("KERNEL_OK")
</pallas_src>

<mosaic_0001>
module attributes {stable_mosaic.version = 11 : i64} {
  func.func @_tc_kernel(%arg0: i32, %arg1: i32, %arg2: memref<1x4x16x16xf32, #tpu.memory_space<vmem>>, %arg3: memref<1x16x64xf32, #tpu.memory_space<vmem>>) attributes {dimension_semantics = [#tpu.dimension_semantics<parallel>, #tpu.dimension_semantics<parallel>], iteration_bounds = array<i64: 2, 1>, scalar_prefetch = 0 : i64, scratch_operands = 0 : i64, tpu.core_type = #tpu.core_type<tc>, window_params = [{transform_indices = @transform_0, window_bounds = array<i64: 1, 4, 16, 16>}, {transform_indices = @transform_1, window_bounds = array<i64: 1, 16, 64>}]} {
    %c0 = arith.constant 0 : index
    %c0_0 = arith.constant 0 : index
    %c0_1 = arith.constant 0 : index
    %c0_2 = arith.constant 0 : index
    %0 = vector.load %arg2[%c0, %c0_0, %c0_1, %c0_2] : memref<1x4x16x16xf32, #tpu.memory_space<vmem>>, vector<1x4x16x16xf32>
    %1 = vector.shape_cast %0 : vector<1x4x16x16xf32> to vector<4x16x16xf32>
    %2 = tpu.transpose %1, [1, 0, 2] : vector<4x16x16xf32> -> vector<16x4x16xf32>
    %3 = vector.shape_cast %2 : vector<16x4x16xf32> to vector<64x16xf32>
    %4 = tpu.transpose %3, [1, 0] : vector<64x16xf32> -> vector<16x64xf32>
    %c0_3 = arith.constant 0 : index
    %c0_4 = arith.constant 0 : index
    %c0_5 = arith.constant 0 : index
    %5 = vector.load %arg3[%c0_3, %c0_4, %c0_5] : memref<1x16x64xf32, #tpu.memory_space<vmem>>, vector<1x16x64xf32>
    %6 = vector.shape_cast %5 : vector<1x16x64xf32> to vector<16x64xf32>
    %7 = vector.shape_cast %4 : vector<16x64xf32> to vector<1x16x64xf32>
    tpu.vector_store %arg3[%c0_3, %c0_4, %c0_5], %7 {strides = array<i32>} : memref<1x16x64xf32, #tpu.memory_space<vmem>>, vector<1x16x64xf32>,
    return
  }
  func.func @transform_0(%arg0: i32, %arg1: i32) -> (i32, i32, i32, i32) {
    %c0_i32 = arith.constant 0 : i32
    %c0_i32_0 = arith.constant 0 : i32
    %c0_i32_1 = arith.constant 0 : i32
    return %arg0, %c0_i32, %c0_i32_0, %arg1 : i32, i32, i32, i32
  }
  func.func @transform_1(%arg0: i32, %arg1: i32) -> (i32, i32, i32) {
    %c0_i32 = arith.constant 0 : i32
    %c0_i32_0 = arith.constant 0 : i32
    return %arg0, %arg1, %c0_i32 : i32, i32, i32
  }
}

</mosaic_0001>

<llo_original>
// kernel: tc_forward.1
$region0: #{tc_forward.1}
  #allocation0 [shape = 'u32[]', space=smem, size = 0x4, offset = 0x4, fixed_abs, tag = 'smem constant byte address 0x4 - core index']
  #allocation1 [shape = 'u32[144,128]{1,0:T(1,128)}', space=vmem, size = 0x12000, scoped, tag = 'internal scratch']
  %s0 = inlined_call_operand.hbm [shape: f32[2,4,16,16], index: 0, kind: input, shape index: {}]
  %s1 = inlined_call_operand.vmem [shape: f32[2,16,64], index: 1, kind: output, shape index: {}]
  %s2 = sld [smem:[#allocation0]]
  $region41: #{tc_forward.1} parent=0
    _
  %s4 = ssub.s32 1, %s2
  %s5 = scalar_select 0, %s4, %s2
  $region1: #{tc_forward.1} parent=0
    #allocation2 [shape = 'u8[65536]{0}', space=vmem, size = 0x10000, scoped, tag = 'input window, operand 0']
    #allocation3 [shape = 's32[2]{0}', space=sflag, size = 0x8, scoped, tag = 'scoped memory for tc_forward.1']
    %6 = vsyncpa [#allocation3], 0
    %s7 = scalar_lea.sflag [#allocation3], 1
    %8 = vsyncpa %s7, 0
    loop: start=0, step=1, limit=4
    $region2: #{tc_forward.1} parent=1 // loop_pre_header
      _
    $region3: #{tc_forward.1} parent=1 // loop_header
      %s10 = sphi 0, %s14
      %p11 = scmp.ge.s32.totalorder %s10, 4
      %s17 = sphi 0, %s29
      %s18 = sphi 0, %s25
      %s19 = sphi 0, %s17
      %s20 = sphi 0, %s18
      %s21 = sphi 0, %s19
      %s22 = sphi 0, %s20
      %s34 = sphi 0, %s36
      %s37 = sphi 0, %s34
      %s38 = sphi 0, %s37
      %s54 = sphi 0, %s38
      %s62 = sphi 0, %s64
      %s65 = sphi 0, %s62
      %s66 = sphi 0, %s65
      %s82 = sphi 0, %s66
    $region4: #{tc_forward.1} parent=1 // loop_header_branch
      %13 = sbr.rel (%p11) target = $region8
    $region5: #{tc_forward.1} parent=1 // loop_body
      %s15 = ssub.s32 %s10, 1
      %s16 = ssub.s32 %s10, 2
      %s23 = sadd.s32 1, %s18
      %p24 = scmp.ge.s32.totalorder %s23, 1
      %s25 = scalar_select %p24, 0, %s23
      %s26 = sadd.s32 1, %s17
      %s27 = scalar_select %p24, %s26, %s17
      %p28 = scmp.ge.s32.totalorder %s27, 2
      %s29 = scalar_select %p28, 0, %s27
      %s30 = ssub.s32 %s17, %s29
      %s31 = ssub.s32 %s18, %s25
      %s32 = sor.u32 %s30, %s31
      %p33 = scmp.eq.s32.totalorder %s32, 0
      %s35 = sadd.s32 %s34, 1
      %s36 = scalar_select %p33, %s34, %s35
      %p39 = pneg %p33
      %p40 = scmp.eq.s32.totalorder %s10, 1
      %p41 = por %p39, %p40
      %p42 = scmp.ne.s32.totalorder %s34, %s37
      %p43 = scmp.eq.s32.totalorder %s10, 0
      %p44 = por %p42, %p43
      %p45 = scmp.ne.s32.totalorder %s34, %s37
      %p46 = scmp.eq.s32.totalorder %s15, 1
      %p47 = por %p45, %p46
      %p48 = scmp.ne.s32.totalorder %s37, %s38
      %p49 = scmp.eq.s32.totalorder %s15, 0
      %p50 = por %p48, %p49
      %p51 = scmp.ne.s32.totalorder %s37, %s38
      %p52 = scmp.eq.s32.totalorder %s16, 1
      %p53 = por %p51, %p52
      %p55 = scmp.ne.s32.totalorder %s38, %s54
      %p56 = scmp.eq.s32.totalorder %s16, 0
      %p57 = por %p55, %p56
      %s58 = ssub.s32 %s17, %s29
      %s59 = ssub.s32 %s18, %s25
      %s60 = sor.u32 %s58, %s59
      %p61 = scmp.eq.s32.totalorder %s60, 0
      %s63 = sadd.s32 %s62, 1
      %s64 = scalar_select %p61, %s62, %s63
      %p67 = pneg %p61
      %p68 = scmp.eq.s32.totalorder %s10, 1
      %p69 = por %p67, %p68
      %p70 = scmp.ne.s32.totalorder %s62, %s65
      %p71 = scmp.eq.s32.totalorder %s10, 0
      %p72 = por %p70, %p71
      %p73 = scmp.ne.s32.totalorder %s62, %s65
      %p74 = scmp.eq.s32.totalorder %s15, 1
      %p75 = por %p73, %p74
      %p76 = scmp.ne.s32.totalorder %s65, %s66
      %p77 = scmp.eq.s32.totalorder %s15, 0
      %p78 = por %p76, %p77
      %p79 = scmp.ne.s32.totalorder %s65, %s66
      %p80 = scmp.eq.s32.totalorder %s16, 1
      %p81 = por %p79, %p80
      %p83 = scmp.ne.s32.totalorder %s66, %s82
      %p84 = scmp.eq.s32.totalorder %s16, 0
      %p85 = por %p83, %p84
      %p86 = scmp.le.s32.totalorder 1, %s10
      %p87 = scmp.lt.s32.totalorder %s10, 3
      %p88 = pnand %p86, %p87
      %p89 = pneg %p88
      // Predicated region
      $region9: #{tc_forward.1} parent=5 // pred_check
        _
      $region10: #{tc_forward.1} parent=5 // pred_check_branch
        %91 = sbr.rel (%p88) target = $region12
      $region11: #{tc_forward.1} parent=5 // pred_region
        %s92 = ssub.s32 %s10, 1
      $region12: #{tc_forward.1} parent=5 // pred_fallthru
        _
      %p93 = scmp.lt.s32.totalorder %s10, 2
      // Predicated region
      $region13: #{tc_forward.1} parent=5 // pred_check
        %p94 = pneg %p93
      $region14: #{tc_forward.1} parent=5 // pred_check_branch
        %96 = sbr.rel (%p94) target = $region16
      $region15: #{tc_forward.1} parent=5 // pred_region
        // Predicated region
        $region17: #{tc_forward.1} parent=15 // pred_check
          %p97 = pneg %p44
        $region18: #{tc_forward.1} parent=15 // pred_check_branch
          %99 = sbr.rel (%p97) target = $region20
        $region19: #{tc_forward.1} parent=15 // pred_region
          %s100 = sand.u32 %s34, 1
          %s101 = scalar_lea.sflag [#allocation3], %s100
          %s102 = sand.u32 %s34, 1
          %s103 = smul.addr %s102, 64
          %s104 = scalar_lea.vmem [#allocation2], %s103
          %s106 = ssub.s32 1024, 1024
          %107 = vsyncadd %s101, %s106
          %s108 = smul.addr %s17, 8
          %s109 = sadd.s32 %s18, %s108
          %s110 = smul.addr %s109, 128
          %s111 = scalar_lea.hbm %s0, %s110
          %s112 = sshll.u32 %s104, 4
          %s113 = int_to_ptr.vmem [resolvable:$true] %s112
          %118 = dma.hbm_to_vmem [thread:$0]  %s111, 1024, %s113, %s101, 128, 128, 8
        $region20: #{tc_forward.1} parent=15 // pred_fallthru
          _
      $region16: #{tc_forward.1} parent=5 // pred_fallthru
        _
      %p119 = scmp.le.s32.totalorder 1, %s10
      %p120 = scmp.lt.s32.totalorder %s10, 3
      %p121 = pnand %p119, %p120
      %p122 = pneg %p121
      // Predicated region
      $region21: #{tc_forward.1} parent=5 // pred_check
        _
      $region22: #{tc_forward.1} parent=5 // pred_check_branch
        %124 = sbr.rel (%p121) target = $region24
      $region23: #{tc_forward.1} parent=5 // pred_region
        %s125 = ssub.s32 %s10, 1
        %s126 = sand.u32 %s37, 1
        %s127 = scalar_lea.sflag [#allocation3], %s126
        %s128 = sand.u32 %s37, 1
        %s129 = smul.addr %s128, 64
        %s130 = scalar_lea.vmem [#allocation2], %s129
        // Predicated region
        $region25: #{tc_forward.1} parent=23 // pred_check
          %p131 = pneg %p50
        $region26: #{tc_forward.1} parent=23 // pred_check_branch
          %133 = sbr.rel (%p131) target = $region28
        $region27: #{tc_forward.1} parent=23 // pred_region
          %134 = dma.done %s127, 1024
        $region28: #{tc_forward.1} parent=23 // pred_fallthru
          _
        %s135 = sand.u32 %s37, 1
        %s136 = scalar_lea.sflag [#allocation3], %s135
        %s137 = sand.u32 %s37, 1
        %s138 = smul.addr %s137, 64
        %s139 = scalar_lea.vmem [#allocation2], %s138
        %p140 = pneg %p50
        %p141 = pneg %p47
        %p142 = pneg %p78
        %p143 = pneg %p75
        %s144 = smul.u32 2, %s20
        %p145 = scmp.lt.s32.totalorder %s19, 1
        %s146 = scalar_select %p145, %s19, 1
        %p147 = scmp.lt.s32.totalorder %s144, 1
        %s148 = scalar_select %p147, %s144, 1
        %s149 = smul.addr %s146, 2
        %s150 = sadd.s32 %s148, %s149
        %s151 = smul.addr %s150, 8
        %s152 = scalar_lea.vmem %s1, %s151
        %s153 = smul.u32 2, %s20
        %p154 = scmp.lt.s32.totalorder %s19, 1
        %s155 = scalar_select %p154, %s19, 1
        %p156 = scmp.lt.s32.totalorder %s153, 1
        %s157 = scalar_select %p156, %s153, 1
        %s158 = smul.addr %s155, 2
        %s159 = sadd.s32 %s157, %s158
        %s160 = smul.addr %s159, 8
        %s161 = scalar_lea.vmem %s1, %s160
        %s162 = smul.u32 2, %s20
        %v163 = vld [vmem:[%s130] sm:$0xff]
        %v164 = vld [vmem:[%s130 + $0x8] sm:$0xff]
        %v165 = vld [vmem:[%s130 + $0x10] sm:$0xff]
        %v166 = vld [vmem:[%s130 + $0x18] sm:$0xff]
        %v167 = vld [vmem:[%s130 + $0x20] sm:$0xff]
        %v168 = vld [vmem:[%s130 + $0x28] sm:$0xff]
        %v169 = vld [vmem:[%s130 + $0x30] sm:$0xff]
        %v170 = vld [vmem:[%s130 + $0x38] sm:$0xff]
        %v171 = vcombine.low %v163, %v167
        %v172 = vcombine.high %v163, %v167
        %v174 = vunpack.c.l.s4 1983009808
        %v175 = vunpack.c.0.s8 %v174
        %v176 = vlaneseq
        %v177 = vshrl.u32 %v176, 7
        %v178 = vsub.s32 %v175, %v177
        %v179 = vrot.slane %v171, %v178
        %v181 = vunpack.c.l.s4 1983009808
        %v182 = vunpack.c.0.s8 %v181
        %v183 = vlaneseq
        %v184 = vshrl.u32 %v183, 7
        %v185 = vsub.s32 %v182, %v184
        %v186 = vrot.slane %v172, %v185
        %v187 = vcombine.low %v165, %v169
        %v188 = vcombine.high %v165, %v169
        %v190 = vunpack.c.l.s4 1983009808
        %v191 = vunpack.c.0.s8 %v190
        %v192 = vlaneseq
        %v193 = vshrl.u32 %v192, 7
        %v194 = vsub.s32 %v191, %v193
        %v195 = vrot.slane %v187, %v194
        %v197 = vunpack.c.l.s4 1983009808
        %v198 = vunpack.c.0.s8 %v197
        %v199 = vlaneseq
        %v200 = vshrl.u32 %v199, 7
        %v201 = vsub.s32 %v198, %v200
        %v202 = vrot.slane %v188, %v201
        %v203 = vcombine.low %v179, %v195
        %v204 = vcombine.high %v179, %v195
        %v206 = vunpack.c.l.s4 1934713408
        %v207 = vunpack.c.0.s8 %v206
        %v208 = vlaneseq
        %v209 = vshrl.u32 %v208, 7
        %v210 = vsub.s32 %v207, %v209
        %v211 = vrot.slane %v203, %v210
        %v213 = vunpack.c.l.s4 1934713408
        %v214 = vunpack.c.0.s8 %v213
        %v215 = vlaneseq
        %v216 = vshrl.u32 %v215, 7
        %v217 = vsub.s32 %v214, %v216
        %v218 = vrot.slane %v204, %v217
        %v219 = vcombine.low %v186, %v202
        %v220 = vcombine.high %v186, %v202
        %v222 = vunpack.c.l.s4 1934713408
        %v223 = vunpack.c.0.s8 %v222
        %v224 = vlaneseq
        %v225 = vshrl.u32 %v224, 7
        %v226 = vsub.s32 %v223, %v225
        %v227 = vrot.slane %v219, %v226
        %v229 = vunpack.c.l.s4 1934713408
        %v230 = vunpack.c.0.s8 %v229
        %v231 = vlaneseq
        %v232 = vshrl.u32 %v231, 7
        %v233 = vsub.s32 %v230, %v232
        %v234 = vrot.slane %v220, %v233
        %v235 = vcombine.high %v211, 0.0
        %v236 = vcombine.high %v218, 0.0
        %v237 = vcombine.high %v227, 0.0
        %v238 = vcombine.high %v234, 0.0
        %v239 = vcombine.low %v164, %v168
        %v240 = vcombine.high %v164, %v168
        %v242 = vunpack.c.l.s4 1983009808
        %v243 = vunpack.c.0.s8 %v242
        %v244 = vlaneseq
        %v245 = vshrl.u32 %v244, 7
        %v246 = vsub.s32 %v243, %v245
        %v247 = vrot.slane %v239, %v246
        %v249 = vunpack.c.l.s4 1983009808
        %v250 = vunpack.c.0.s8 %v249
        %v251 = vlaneseq
        %v252 = vshrl.u32 %v251, 7
        %v253 = vsub.s32 %v250, %v252
        %v254 = vrot.slane %v240, %v253
        %v255 = vcombine.low %v166, %v170
        %v256 = vcombine.high %v166, %v170
        %v258 = vunpack.c.l.s4 1983009808
        %v259 = vunpack.c.0.s8 %v258
        %v260 = vlaneseq
        %v261 = vshrl.u32 %v260, 7
        %v262 = vsub.s32 %v259, %v261
        %v263 = vrot.slane %v255, %v262
        %v265 = vunpack.c.l.s4 1983009808
        %v266 = vunpack.c.0.s8 %v265
        %v267 = vlaneseq
        %v268 = vshrl.u32 %v267, 7
        %v269 = vsub.s32 %v266, %v268
        %v270 = vrot.slane %v256, %v269
        %v271 = vcombine.low %v247, %v263
        %v272 = vcombine.high %v247, %v263
        %v274 = vunpack.c.l.s4 1934713408
        %v275 = vunpack.c.0.s8 %v274
        %v276 = vlaneseq
        %v277 = vshrl.u32 %v276, 7
        %v278 = vsub.s32 %v275, %v277
        %v279 = vrot.slane %v271, %v278
        %v281 = vunpack.c.l.s4 1934713408
        %v282 = vunpack.c.0.s8 %v281
        %v283 = vlaneseq
        %v284 = vshrl.u32 %v283, 7
        %v285 = vsub.s32 %v282, %v284
        %v286 = vrot.slane %v272, %v285
        %v287 = vcombine.low %v254, %v270
        %v288 = vcombine.high %v254, %v270
        %v290 = vunpack.c.l.s4 1934713408
        %v291 = vunpack.c.0.s8 %v290
        %v292 = vlaneseq
        %v293 = vshrl.u32 %v292, 7
        %v294 = vsub.s32 %v291, %v293
        %v295 = vrot.slane %v287, %v294
        %v297 = vunpack.c.l.s4 1934713408
        %v298 = vunpack.c.0.s8 %v297
        %v299 = vlaneseq
        %v300 = vshrl.u32 %v299, 7
        %v301 = vsub.s32 %v298, %v300
        %v302 = vrot.slane %v288, %v301
        %v303 = vcombine.high %v279, 0.0
        %v304 = vcombine.high %v286, 0.0
        %v305 = vcombine.high %v295, 0.0
        %v306 = vcombine.high %v302, 0.0
        %v323 = vcombine.low %v211, %v235
        %v324 = vcombine.low %v218, %v236
        %v325 = vcombine.low %v227, %v237
        %v326 = vcombine.low %v234, %v238
        %v327 = vcombine.low %v279, %v303
        %v328 = vcombine.low %v286, %v304
        %v329 = vcombine.low %v295, %v305
        %v330 = vcombine.low %v302, %v306
        %339 = vxpose.xlu0.b32.start [1/16] %v323, 128
        %340 = vxpose.xlu0.b32.cont [2/16] %v324, 128
        %341 = vxpose.xlu0.b32.cont [3/16] %v325, 128
        %342 = vxpose.xlu0.b32.cont [4/16] %v326, 128
        %343 = vxpose.xlu0.b32.cont [5/16] %v327, 128
        %344 = vxpose.xlu0.b32.cont [6/16] %v328, 128
        %345 = vxpose.xlu0.b32.cont [7/16] %v329, 128
        %346 = vxpose.xlu0.b32.cont [8/16] %v330, 128
        %347 = vxpose.xlu0.b32.cont [9/16] 0.0, 128
        %348 = vxpose.xlu0.b32.cont [10/16] 0.0, 128
        %349 = vxpose.xlu0.b32.cont [11/16] 0.0, 128
        %350 = vxpose.xlu0.b32.cont [12/16] 0.0, 128
        %351 = vxpose.xlu0.b32.cont [13/16] 0.0, 128
        %352 = vxpose.xlu0.b32.cont [14/16] 0.0, 128
        %353 = vxpose.xlu0.b32.cont [15/16] 0.0, 128
        %354 = vxpose.xlu0.b32.end [16/16] 0.0, 128
        %v355 = vpop.trf.xlu0
        %v356 = vpop.trf.xlu0
        %v357 = vpop.trf.xlu0
        %v358 = vpop.trf.xlu0
        %v359 = vpop.trf.xlu0
        %v360 = vpop.trf.xlu0
        %v361 = vpop.trf.xlu0
        %v362 = vpop.trf.xlu0
        %v363 = vpop.trf.xlu0
        %v364 = vpop.trf.xlu0
        %v365 = vpop.trf.xlu0
        %v366 = vpop.trf.xlu0
        %v367 = vpop.trf.xlu0
        %v368 = vpop.trf.xlu0
        %v369 = vpop.trf.xlu0
        %v370 = vpop.trf.xlu0
        %vm371 = vcmask 523264
        %372 = vst.msk [vmem:[%s161] sm:$0xff] %vm371, %v355
        %373 = vst.msk [vmem:[%s161 + $0x8] sm:$0xff] %vm371, %v356
        %s374 = smul.u32 2, %s20
        %p375 = scmp.lt.s32.totalorder %s19, 1
        %s376 = scalar_select %p375, %s19, 1
        %p377 = scmp.lt.s32.totalorder %s374, 1
        %s378 = scalar_select %p377, %s374, 1
        %s379 = smul.addr %s376, 2
        %s380 = sadd.s32 %s378, %s379
        %s381 = smul.addr %s380, 8
        %s382 = scalar_lea.vmem %s1, %s381
        // Predicated region
        $region29: #{tc_forward.1} parent=23 // pred_check
          %p383 = pneg %p75
        $region30: #{tc_forward.1} parent=23 // pred_check_branch
          %385 = sbr.rel (%p383) target = $region32
        $region31: #{tc_forward.1} parent=23 // pred_region
          %s386 = smul.u32 2, %s20
        $region32: #{tc_forward.1} parent=23 // pred_fallthru
          _
      $region24: #{tc_forward.1} parent=5 // pred_fallthru
        _
      %p387 = scmp.le.s32.totalorder 2, %s10
      // Predicated region
      $region33: #{tc_forward.1} parent=5 // pred_check
        %p388 = pneg %p387
      $region34: #{tc_forward.1} parent=5 // pred_check_branch
        %390 = sbr.rel (%p388) target = $region36
      $region35: #{tc_forward.1} parent=5 // pred_region
        %s391 = ssub.s32 %s10, 2
        // Predicated region
        $region37: #{tc_forward.1} parent=35 // pred_check
          %p392 = pneg %p81
        $region38: #{tc_forward.1} parent=35 // pred_check_branch
          %394 = sbr.rel (%p392) target = $region40
        $region39: #{tc_forward.1} parent=35 // pred_region
          %s395 = smul.u32 2, %s22
          %p396 = scmp.lt.s32.totalorder %s21, 1
          %s397 = scalar_select %p396, %s21, 1
          %p398 = scmp.lt.s32.totalorder %s395, 1
          %s399 = scalar_select %p398, %s395, 1
          %s400 = smul.addr %s397, 2
          %s401 = sadd.s32 %s399, %s400
          %s402 = smul.addr %s401, 8
          %s403 = scalar_lea.vmem %s1, %s402
        $region40: #{tc_forward.1} parent=35 // pred_fallthru
          _
      $region36: #{tc_forward.1} parent=5 // pred_fallthru
        _
    $region6: #{tc_forward.1} parent=1 // loop_footer
      %s14 = sadd.s32 1, %s10
    $region7: #{tc_forward.1} parent=1 // loop_footer_branch
      %9 = sbr.rel target = $region3
    $region8: #{tc_forward.1} parent=1 // loop_exit
      _
    %404 = vsyncpa [#allocation3], 1
    %s405 = scalar_lea.sflag [#allocation3], 1
    %406 = vsyncpa %s405, 1

</llo_original>
